<compile_context>
chip_gen: v7x
topology: tpu7x:2x2x1
jax: 0.10.0
libtpu: 0.0.40
codegen_flags: <defaults>
</compile_context>

<pallas_src>
import functools

import jax
import jax.numpy as jnp
from jax import lax
from jax.experimental import pallas as pl
from jax.experimental.pallas import tpu as pltpu

EPS = 1e-5
_Z_RESIDENT_BUDGET_BYTES = 4 * 1024 * 1024  # keep z whole-resident below this


# --------------------------------------------------------------------------
# Pallas kernel: N^2 aggregation  out = relu(Ahat @ zw + b) * scale + shift
# --------------------------------------------------------------------------
def _gcn_agg_kernel(adj_ref, z_ref, b_ref, s_ref, t_ref, out_ref, acc_ref,
                    *, tk, z_resident):
    """Grid: (i = node-row tiles, k = reduction tiles over nodes).

    acc_ref: f32 accumulator (tile, H), resident across k (pl.when init/fin).
    adj_ref: (tile, tile) adjacency tile, already in the matmul dtype.
    z_ref:   pre-projected node features (z @ W); whole-resident (n_pad, H)
             when z_resident else the (tk, H) reduction tile.
    """
    k = pl.program_id(1)

    @pl.when(k == 0)
    def _():
        acc_ref[...] = jnp.zeros_like(acc_ref)

    if z_resident:
        off = pl.multiple_of(k * tk, tk)
        z = z_ref[pl.ds(off, tk), :]
    else:
        z = z_ref[...]

    acc_ref[...] += jnp.dot(adj_ref[...], z, preferred_element_type=jnp.float32)

    @pl.when(k == pl.num_programs(1) - 1)
    def _():
        h = jnp.maximum(acc_ref[...] + b_ref[...], 0.0)          # bias + ReLU
        out_ref[...] = (h * s_ref[...] + t_ref[...]).astype(out_ref.dtype)


def _gcn_agg_layer(adj_mm, zw, b, scale, shift, *, tile, out_dtype, z_resident):
    """One GCNConv aggregation + bias + ReLU + folded-BN as a tiled pallas_call."""
    n_pad = adj_mm.shape[0]
    h = zw.shape[1]
    grid = (n_pad // tile, n_pad // tile)

    if z_resident:
        z_spec = pl.BlockSpec((n_pad, h), lambda i, k: (0, 0))     # DMA'd once
    else:
        z_spec = pl.BlockSpec((tile, h), lambda i, k: (k, 0))      # streamed

    kernel = functools.partial(_gcn_agg_kernel, tk=tile, z_resident=z_resident)

    flops = 2 * n_pad * n_pad * h
    z_bytes = (zw.size if z_resident else grid[0] * n_pad * h) * zw.dtype.itemsize
    bytes_accessed = (
        n_pad * n_pad * adj_mm.dtype.itemsize        # adjacency stream (dominant)
        + z_bytes                                    # pre-projected features
        + n_pad * h * jnp.dtype(out_dtype).itemsize  # output
        + 3 * h * 4                                  # bias / folded-BN vectors
    )

    return pl.pallas_call(
        kernel,
        out_shape=jax.ShapeDtypeStruct((n_pad, h), out_dtype),
        grid_spec=pltpu.PrefetchScalarGridSpec(
            num_scalar_prefetch=0,
            grid=grid,
            in_specs=[
                # Adjacency tile: the only N^2 stream, double-buffered DMA.
                pl.BlockSpec((tile, tile), lambda i, k: (i, k)),
                z_spec,
                # Whole-resident bias / folded-BN scale & shift.
                pl.BlockSpec((1, h), lambda i, k: (0, 0)),
                pl.BlockSpec((1, h), lambda i, k: (0, 0)),
                pl.BlockSpec((1, h), lambda i, k: (0, 0)),
            ],
            out_specs=pl.BlockSpec((tile, h), lambda i, k: (i, 0)),
            scratch_shapes=[pltpu.VMEM((tile, h), jnp.float32)],
        ),
        compiler_params=pltpu.CompilerParams(
            dimension_semantics=("parallel", "arbitrary")),
        cost_estimate=pl.CostEstimate(
            flops=flops, transcendentals=0, bytes_accessed=bytes_accessed),
    )(adj_mm, zw, b, scale, shift)


# --------------------------------------------------------------------------
# Plain-JAX glue (data-dependent scatter / tiny ops).
# --------------------------------------------------------------------------
def build_normalized_adjacency(edge_index, num_nodes, n_pad, dtype):
    """Dense Ahat = D^-1/2 (A + I) D^-1/2 (PyG gcn_norm), built at padded size."""
    src = edge_index[0]
    dst = edge_index[1]
    loop = jnp.arange(num_nodes, dtype=src.dtype)
    src = jnp.concatenate([src, loop])
    dst = jnp.concatenate([dst, loop])
    ones = jnp.ones(src.shape[0], jnp.float32)
    deg = jnp.zeros((num_nodes,), jnp.float32).at[dst].add(ones)
    dinv = jnp.where(deg > 0, lax.rsqrt(deg), 0.0)
    w = dinv[src] * dinv[dst]
    # message flows src -> dst, aggregated at dst:  out[dst] += w * x[src]
    adj = jnp.zeros((n_pad, n_pad), jnp.float32).at[dst, src].add(w)
    return adj.astype(dtype)   # single cast, no separate pad pass


def build_pool_matrix(batch, num_graphs, n_pad):
    """P[b, i] = 1/count(b) if batch[i] == b else 0 (global mean pool), padded."""
    num_nodes = batch.shape[0]
    batch_p = jnp.full((n_pad,), num_graphs, batch.dtype).at[:num_nodes].set(batch)
    onehot = (batch_p[None, :] == jnp.arange(num_graphs)[:, None]).astype(jnp.float32)
    counts = jnp.maximum(onehot.sum(axis=1, keepdims=True), 1.0)
    return onehot / counts


def _fold_bn(bn):
    """bn rows: 0=gamma, 1=beta, 2=running_mean, 3=running_var -> scale/shift."""
    gamma, beta, mean, var = bn[0], bn[1], bn[2], bn[3]
    scale = gamma * lax.rsqrt(var + EPS)
    shift = beta - mean * scale
    return scale[None, :], shift[None, :]


@functools.partial(
    jax.jit, static_argnames=("num_graphs", "tile", "matmul_dtype", "z_resident"))
def graphtransgeo_gcn_forward(params, x, edge_index, batch, num_graphs, *,
                              tile=512, matmul_dtype=jnp.bfloat16,
                              z_resident=None):
    num_nodes = x.shape[0]
    hidden = params["w1"].shape[1]
    n_pad = pl.cdiv(num_nodes, tile) * tile
    pad = n_pad - num_nodes

    if z_resident is None:
        z_resident = (n_pad * hidden * jnp.dtype(matmul_dtype).itemsize
                      <= _Z_RESIDENT_BUDGET_BYTES)

    # Dominant N^2 array built at padded size and stored in the matmul dtype
    # (bf16 halves the HBM stream); accumulation inside the kernel is f32.
    adj_mm = build_normalized_adjacency(edge_index, num_nodes, n_pad, matmul_dtype)
    pool = build_pool_matrix(batch, num_graphs, n_pad)

    # Fold all eval-mode BatchNorms into scale/shift (single FMA per element).
    s_in, t_in = _fold_bn(params["bn_in"])
    s1, t1 = _fold_bn(params["bn1"])
    s2, t2 = _fold_bn(params["bn2"])

    # Input BN (eval dropout = identity) + layer-1 feature projection in XLA.
    # GCNConv: Ahat @ (z @ W) + b -- the tiny [N,F]@[F,H] projection runs
    # outside the kernel so the N^2 aggregation is always 128 lanes wide.
    z0 = x * s_in + t_in
    zw1 = jnp.dot(z0, params["w1"], preferred_element_type=jnp.float32)
    zw1 = jnp.pad(zw1, ((0, pad), (0, 0))).astype(matmul_dtype)

    # Layer 1: output kept in the matmul dtype (halves writeback + next read).
    h1 = _gcn_agg_layer(adj_mm, zw1, params["b1"], s1, t1,
                        tile=tile, out_dtype=matmul_dtype, z_resident=z_resident)

    # Layer 2 projection in XLA (small [N,H]@[H,H], f32 accumulation).
    zw2 = jnp.dot(h1, params["w2"],
                  preferred_element_type=jnp.float32).astype(matmul_dtype)
    h2 = _gcn_agg_layer(adj_mm, zw2, params["b2"], s2, t2,
                        tile=tile, out_dtype=jnp.float32, z_resident=z_resident)

    # global_mean_pool + output Linear: tiny [B,N]@[N,H] and [B,H]@[H,O] ops
    # done in XLA so the Pallas outputs stay lane-dense (last dim = hidden).
    pooled = jnp.dot(pool, h2, preferred_element_type=jnp.float32)
    return (jnp.dot(pooled, params["wout"], preferred_element_type=jnp.float32)
            + params["bout"])


# --------------------------------------------------------------------------
# Pure-JAX reference + synthetic params.
# --------------------------------------------------------------------------
def reference_forward(params, x, edge_index, batch, num_graphs):
    n = x.shape[0]
    adj = build_normalized_adjacency(edge_index, n, n, jnp.float32)
    pool = build_pool_matrix(batch, num_graphs, n)

    def bn(h, p):
        return (h - p[2:3]) * lax.rsqrt(p[3:4] + EPS) * p[0:1] + p[1:2]

    h = bn(x, params["bn_in"])
    h = jnp.maximum(adj @ (h @ params["w1"]) + params["b1"], 0.0)
    h = bn(h, params["bn1"])
    h = jnp.maximum(adj @ (h @ params["w2"]) + params["b2"], 0.0)
    h = bn(h, params["bn2"])
    return (pool @ h) @ params["wout"] + params["bout"]


def init_params(key, input_dim, hidden_dim, output_dim):
    """Deterministic synthetic parameters (He-style scaling for weights)."""
    ks = jax.random.split(key, 10)

    def he(k, fan_in, shape):
        return jax.random.normal(k, shape, jnp.float32) * jnp.sqrt(2.0 / fan_in)

    def bn_params(k, dim):
        k1, k2, k3, k4 = jax.random.split(k, 4)
        gamma = 1.0 + 0.1 * jax.random.normal(k1, (dim,), jnp.float32)
        beta = 0.1 * jax.random.normal(k2, (dim,), jnp.float32)
        mean = 0.1 * jax.random.normal(k3, (dim,), jnp.float32)
        var = 1.0 + 0.1 * jnp.abs(jax.random.normal(k4, (dim,), jnp.float32))
        return jnp.stack([gamma, beta, mean, var], axis=0)  # [4, dim]

    return {
        "bn_in": bn_params(ks[0], input_dim),
        # weights pre-transposed to [in, out]
        "w1": he(ks[1], input_dim, (input_dim, hidden_dim)),
        "b1": jnp.zeros((1, hidden_dim), jnp.float32),
        "bn1": bn_params(ks[2], hidden_dim),
        "w2": he(ks[3], hidden_dim, (hidden_dim, hidden_dim)),
        "b2": jnp.zeros((1, hidden_dim), jnp.float32),
        "bn2": bn_params(ks[4], hidden_dim),
        "wout": he(ks[5], hidden_dim, (hidden_dim, output_dim)),
        "bout": jnp.zeros((1, output_dim), jnp.float32),
    }


if __name__ == "__main__":
    # Small but non-trivial: default tile=512 -> n_pad=1024, a (2, 2) grid
    # (both megacore TCs get a row tile) with resident z; the f32 check path
    # uses tile=128 / streamed z to exercise the multi-step streamed variant.
    NUM_NODES = 700           # deliberately not a multiple of the tile
    INPUT_DIM = 32
    HIDDEN_DIM = 128
    OUTPUT_DIM = 2
    NUM_GRAPHS = 2            # 350 nodes per graph

    key = jax.random.PRNGKey(0)
    k_param, k_x = jax.random.split(key)

    params = init_params(k_param, INPUT_DIM, HIDDEN_DIM, OUTPUT_DIM)
    x = jax.random.normal(k_x, (NUM_NODES, INPUT_DIM), jnp.float32)

    # Deterministic edge_index: a bidirectional ring inside each graph.
    src_list, dst_list = [], []
    nodes_per_graph = NUM_NODES // NUM_GRAPHS
    for g in range(NUM_GRAPHS):
        base = g * nodes_per_graph
        for i in range(nodes_per_graph):
            a = base + i
            b = base + (i + 1) % nodes_per_graph
            src_list += [a, b]
            dst_list += [b, a]
    edge_index = jnp.array([src_list, dst_list], dtype=jnp.int32)  # [2, E]
    batch = jnp.repeat(jnp.arange(NUM_GRAPHS, dtype=jnp.int32), nodes_per_graph)

    ref = reference_forward(params, x, edge_index, batch, NUM_GRAPHS)

    # f32 matmul path (streamed z, fine-grained grid): tight reference check.
    out_f32 = graphtransgeo_gcn_forward(
        params, x, edge_index, batch, NUM_GRAPHS,
        tile=128, matmul_dtype=jnp.float32, z_resident=False)
    out_f32 = jax.block_until_ready(out_f32)
    assert out_f32.shape == (NUM_GRAPHS, OUTPUT_DIM)
    assert jnp.allclose(out_f32, ref, atol=5e-3, rtol=5e-3), (out_f32, ref)

    # bf16 fast path (defaults: tile=512, resident z, bf16 adjacency/features).
    out_bf16 = graphtransgeo_gcn_forward(params, x, edge_index, batch, NUM_GRAPHS)
    out_bf16 = jax.block_until_ready(out_bf16)
    assert out_bf16.shape == (NUM_GRAPHS, OUTPUT_DIM)
    assert jnp.allclose(out_bf16, ref, atol=6e-2, rtol=6e-2), (out_bf16, ref)

    print("KERNEL_OK")
</pallas_src>

<mosaic_0001>
module attributes {stable_mosaic.version = 11 : i64} {
  func.func @_gcn_agg_kernel(%arg0: i32, %arg1: i32, %arg2: memref<128x128xf32, #tpu.memory_space<vmem>>, %arg3: memref<128x128xf32, #tpu.memory_space<vmem>>, %arg4: memref<1x128xf32, #tpu.memory_space<vmem>>, %arg5: memref<1x128xf32, #tpu.memory_space<vmem>>, %arg6: memref<1x128xf32, #tpu.memory_space<vmem>>, %arg7: memref<128x128xf32, #tpu.memory_space<vmem>>, %arg8: memref<128x128xf32, #tpu.memory_space<vmem>>) attributes {dimension_semantics = [#tpu.dimension_semantics<parallel>, #tpu.dimension_semantics<arbitrary>], iteration_bounds = array<i64: 6, 6>, scalar_prefetch = 0 : i64, scratch_operands = 1 : i64, tpu.core_type = #tpu.core_type<tc>, window_params = [{transform_indices = @transform_0, window_bounds = array<i64: 128, 128>}, {transform_indices = @transform_1, window_bounds = array<i64: 128, 128>}, {pipeline_mode = #tpu.pipeline_mode<synchronous>, transform_indices = @transform_2, window_bounds = array<i64: 1, 128>}, {pipeline_mode = #tpu.pipeline_mode<synchronous>, transform_indices = @transform_3, window_bounds = array<i64: 1, 128>}, {pipeline_mode = #tpu.pipeline_mode<synchronous>, transform_indices = @transform_4, window_bounds = array<i64: 1, 128>}, {transform_indices = @transform_5, window_bounds = array<i64: 128, 128>}]} {
    %c0_i32 = arith.constant 0 : i32
    %0 = arith.cmpi eq, %arg1, %c0_i32 : i32
    %1 = arith.extui %0 : i1 to i32
    %c0_i32_0 = arith.constant 0 : i32
    %2 = arith.cmpi ne, %1, %c0_i32_0 : i32
    scf.if %2 {
      %cst_9 = arith.constant 0.000000e+00 : f32
      %12 = vector.broadcast %cst_9 : f32 to vector<128x128xf32>
      %c0_10 = arith.constant 0 : index
      %c0_11 = arith.constant 0 : index
      %13 = vector.load %arg8[%c0_10, %c0_11] : memref<128x128xf32, #tpu.memory_space<vmem>>, vector<128x128xf32>
      tpu.vector_store %arg8[%c0_10, %c0_11], %12 {strides = array<i32>} : memref<128x128xf32, #tpu.memory_space<vmem>>, vector<128x128xf32>,
    } else {
    }
    %c0 = arith.constant 0 : index
    %c0_1 = arith.constant 0 : index
    %3 = vector.load %arg3[%c0, %c0_1] : memref<128x128xf32, #tpu.memory_space<vmem>>, vector<128x128xf32>
    %c0_2 = arith.constant 0 : index
    %c0_3 = arith.constant 0 : index
    %4 = vector.load %arg8[%c0_2, %c0_3] : memref<128x128xf32, #tpu.memory_space<vmem>>, vector<128x128xf32>
    %c0_4 = arith.constant 0 : index
    %c0_5 = arith.constant 0 : index
    %5 = vector.load %arg2[%c0_4, %c0_5] : memref<128x128xf32, #tpu.memory_space<vmem>>, vector<128x128xf32>
    %cst = arith.constant dense<0.000000e+00> : vector<128x128xf32>
    %6 = tpu.matmul %5, %3, %cst {dimension_numbers = #tpu.dot_dimension_numbers<[1], [0], [0], [1], [0, 0, 1, 1], [], []>} : vector<128x128xf32>, vector<128x128xf32>, vector<128x128xf32> -> vector<128x128xf32>
    %7 = arith.addf %4, %6 : vector<128x128xf32>
    %c0_6 = arith.constant 0 : index
    %c0_7 = arith.constant 0 : index
    %8 = vector.load %arg8[%c0_6, %c0_7] : memref<128x128xf32, #tpu.memory_space<vmem>>, vector<128x128xf32>
    tpu.vector_store %arg8[%c0_6, %c0_7], %7 {strides = array<i32>} : memref<128x128xf32, #tpu.memory_space<vmem>>, vector<128x128xf32>,
    %c5_i32 = arith.constant 5 : i32
    %9 = arith.cmpi eq, %arg1, %c5_i32 : i32
    %10 = arith.extui %9 : i1 to i32
    %c0_i32_8 = arith.constant 0 : i32
    %11 = arith.cmpi ne, %10, %c0_i32_8 : i32
    scf.if %11 {
      %c0_9 = arith.constant 0 : index
      %c0_10 = arith.constant 0 : index
      %12 = vector.load %arg8[%c0_9, %c0_10] : memref<128x128xf32, #tpu.memory_space<vmem>>, vector<128x128xf32>
      %c0_11 = arith.constant 0 : index
      %c0_12 = arith.constant 0 : index
      %13 = vector.load %arg4[%c0_11, %c0_12] : memref<1x128xf32, #tpu.memory_space<vmem>>, vector<1x128xf32>
      %14 = vector.broadcast %13 : vector<1x128xf32> to vector<128x128xf32>
      %15 = arith.addf %12, %14 : vector<128x128xf32>
      %cst_13 = arith.constant 0.000000e+00 : f32
      %16 = vector.broadcast %cst_13 : f32 to vector<128x128xf32>
      %17 = arith.maximumf %15, %16 : vector<128x128xf32>
      %c0_14 = arith.constant 0 : index
      %c0_15 = arith.constant 0 : index
      %18 = vector.load %arg5[%c0_14, %c0_15] : memref<1x128xf32, #tpu.memory_space<vmem>>, vector<1x128xf32>
      %19 = vector.broadcast %18 : vector<1x128xf32> to vector<128x128xf32>
      %20 = arith.mulf %17, %19 : vector<128x128xf32>
      %c0_16 = arith.constant 0 : index
      %c0_17 = arith.constant 0 : index
      %21 = vector.load %arg6[%c0_16, %c0_17] : memref<1x128xf32, #tpu.memory_space<vmem>>, vector<1x128xf32>
      %22 = vector.broadcast %21 : vector<1x128xf32> to vector<128x128xf32>
      %23 = arith.addf %20, %22 : vector<128x128xf32>
      %c0_18 = arith.constant 0 : index
      %c0_19 = arith.constant 0 : index
      %24 = vector.load %arg7[%c0_18, %c0_19] : memref<128x128xf32, #tpu.memory_space<vmem>>, vector<128x128xf32>
      tpu.vector_store %arg7[%c0_18, %c0_19], %23 {strides = array<i32>} : memref<128x128xf32, #tpu.memory_space<vmem>>, vector<128x128xf32>,
    } else {
    }
    return
  }
  func.func @transform_0(%arg0: i32, %arg1: i32) -> (i32, i32) {
    %c0_i32 = arith.constant 0 : i32
    return %arg0, %arg1 : i32, i32
  }
  func.func @transform_1(%arg0: i32, %arg1: i32) -> (i32, i32) {
    %c0_i32 = arith.constant 0 : i32
    %c0_i32_0 = arith.constant 0 : i32
    return %arg1, %c0_i32 : i32, i32
  }
  func.func @transform_2(%arg0: i32, %arg1: i32) -> (i32, i32) {
    %c0_i32 = arith.constant 0 : i32
    %c0_i32_0 = arith.constant 0 : i32
    %c0_i32_1 = arith.constant 0 : i32
    return %c0_i32, %c0_i32_0 : i32, i32
  }
  func.func @transform_3(%arg0: i32, %arg1: i32) -> (i32, i32) {
    %c0_i32 = arith.constant 0 : i32
    %c0_i32_0 = arith.constant 0 : i32
    %c0_i32_1 = arith.constant 0 : i32
    return %c0_i32, %c0_i32_0 : i32, i32
  }
  func.func @transform_4(%arg0: i32, %arg1: i32) -> (i32, i32) {
    %c0_i32 = arith.constant 0 : i32
    %c0_i32_0 = arith.constant 0 : i32
    %c0_i32_1 = arith.constant 0 : i32
    return %c0_i32, %c0_i32_0 : i32, i32
  }
  func.func @transform_5(%arg0: i32, %arg1: i32) -> (i32, i32) {
    %c0_i32 = arith.constant 0 : i32
    %c0_i32_0 = arith.constant 0 : i32
    return %arg0, %c0_i32 : i32, i32
  }
}

</mosaic_0001>

<llo_original>
// kernel: mul.11
$region0: #{mul.11}
  #allocation0 [shape = 's32[1]{0}', space=sflag, size = 0x4, scoped, tag = 'scoped memory for mul.11']
  %s0 = inlined_call_operand.vmem [shape: f32[2100], index: 0, kind: input, shape index: {}]
  %s1 = inlined_call_operand.vmem [shape: f32[2100], index: 1, kind: input, shape index: {}]
  %s2 = inlined_call_operand.vmem [shape: f32[2100], index: 2, kind: output, shape index: {}]
  %v3 = vld [vmem:[%s0] sm:$0xff]
  %v4 = vld [vmem:[%s1] sm:$0xff]
  %5 = xla_tuple %v3, %v4
  %6 = xla_tuple %5
  %v7 = vmul.f32 %v3, %v4
  %8 = xla_tuple %v7
  %9 = vst [vmem:[%s2] sm:$0xff] %v7
  %s10 = scalar_lea.vmem %s0, 8
  %v11 = vld [vmem:[%s10] sm:$0xff]
  %s12 = scalar_lea.vmem %s1, 8
  %v13 = vld [vmem:[%s12] sm:$0xff]
  %14 = xla_tuple %v11, %v13
  %15 = xla_tuple %14
  %v16 = vmul.f32 %v11, %v13
  %17 = xla_tuple %v16
  %s18 = scalar_lea.vmem %s2, 8
  %19 = vst [vmem:[%s18] sm:$0xff] %v16
  %s20 = scalar_lea.vmem %s0, 16
  %v21 = vld [vmem:[%s20] sm:$0xff]
  %s22 = scalar_lea.vmem %s1, 16
  %v23 = vld [vmem:[%s22] sm:$0xff]
  %24 = xla_tuple %v21, %v23
  %25 = xla_tuple %24
  %v26 = vmul.f32 %v21, %v23
  %27 = xla_tuple %v26
  %s28 = scalar_lea.vmem %s2, 16
  %29 = vst [vmem:[%s28] sm:$0xff] %v26

// kernel: graphtransgeo_gcn_forward.2
$region0: #{graphtransgeo_gcn_forward.2}
  #allocation0 [shape = 'u32[]', space=smem, size = 0x4, offset = 0x4, fixed_abs, tag = 'smem constant byte address 0x4 - core index']
  #allocation1 [shape = 'u32[144,128]{1,0:T(1,128)}', space=vmem, size = 0x12000, scoped, tag = 'internal scratch']
  #allocation2 [shape = 'f32[128,128]{1,0:T(8,128)}', space=vmem, size = 0x10000, scoped, tag = 'scratch operand']
  %s0 = inlined_call_operand.vmem [shape: f32[768,768], index: 0, kind: input, shape index: {}]
  %s1 = inlined_call_operand.vmem [shape: f32[768,128], index: 1, kind: input, shape index: {}]
  %s2 = inlined_call_operand.vmem [shape: f32[1,128], index: 2, kind: input, shape index: {}]
  %s3 = inlined_call_operand.vmem [shape: f32[1,128], index: 3, kind: input, shape index: {}]
  %s4 = inlined_call_operand.vmem [shape: f32[1,128], index: 4, kind: input, shape index: {}]
  %s5 = inlined_call_operand.vmem [shape: f32[768,128], index: 5, kind: output, shape index: {}]
  %s6 = sld [smem:[#allocation0]]
  $region99: #{graphtransgeo_gcn_forward.2} parent=0
    _
  %s8 = ssub.s32 1, %s6
  %s9 = scalar_select 0, %s8, %s6
  $region1: #{graphtransgeo_gcn_forward.2} parent=0
    #allocation3 [shape = 'u8[131072]{0}', space=vmem, size = 0x20000, scoped, tag = 'input window, operand 0']
    loop: start=0, step=1, limit=38
    $region2: #{graphtransgeo_gcn_forward.2} parent=1 // loop_pre_header
      _
    $region3: #{graphtransgeo_gcn_forward.2} parent=1 // loop_header
      %s11 = sphi 0, %s15
      %p12 = scmp.ge.s32.totalorder %s11, 38
      %s18 = sphi 0, %s30
      %s19 = sphi 0, %s26
      %s20 = sphi 0, %s18
      %s21 = sphi 0, %s19
      %s22 = sphi 0, %s20
      %s23 = sphi 0, %s21
      %s35 = sphi 0, %s37
      %s38 = sphi 0, %s35
      %s39 = sphi 0, %s38
      %s55 = sphi 0, %s39
      %s61 = sphi 0, %s63
      %s64 = sphi 0, %s61
      %s65 = sphi 0, %s64
      %s81 = sphi 0, %s65
      %s85 = sphi 0, %s85
      %s87 = sphi 0, %s85
      %s88 = sphi 0, %s87
      %s102 = sphi 0, %s88
      %s106 = sphi 0, %s106
      %s108 = sphi 0, %s106
      %s109 = sphi 0, %s108
      %s123 = sphi 0, %s109
      %s127 = sphi 0, %s127
      %s129 = sphi 0, %s127
      %s130 = sphi 0, %s129
      %s144 = sphi 0, %s130
      %s150 = sphi 0, %s152
      %s153 = sphi 0, %s150
      %s154 = sphi 0, %s153
      %s170 = sphi 0, %s154
    $region4: #{graphtransgeo_gcn_forward.2} parent=1 // loop_header_branch
      %14 = sbr.rel (%p12) target = $region8
    $region5: #{graphtransgeo_gcn_forward.2} parent=1 // loop_body
      %s16 = ssub.s32 %s11, 1
      %s17 = ssub.s32 %s11, 2
      %s24 = sadd.s32 1, %s19
      %p25 = scmp.ge.s32.totalorder %s24, 6
      %s26 = scalar_select %p25, 0, %s24
      %s27 = sadd.s32 1, %s18
      %s28 = scalar_select %p25, %s27, %s18
      %p29 = scmp.ge.s32.totalorder %s28, 6
      %s30 = scalar_select %p29, 0, %s28
      %s31 = ssub.s32 %s18, %s30
      %s32 = ssub.s32 %s19, %s26
      %s33 = sor.u32 %s31, %s32
      %p34 = scmp.eq.s32.totalorder %s33, 0
      %s36 = sadd.s32 %s35, 1
      %s37 = scalar_select %p34, %s35, %s36
      %p40 = pneg %p34
      %p41 = scmp.eq.s32.totalorder %s11, 35
      %p42 = por %p40, %p41
      %p43 = scmp.ne.s32.totalorder %s35, %s38
      %p44 = scmp.eq.s32.totalorder %s11, 0
      %p45 = por %p43, %p44
      %p46 = scmp.ne.s32.totalorder %s35, %s38
      %p47 = scmp.eq.s32.totalorder %s16, 35
      %p48 = por %p46, %p47
      %p49 = scmp.ne.s32.totalorder %s38, %s39
      %p50 = scmp.eq.s32.totalorder %s16, 0
      %p51 = por %p49, %p50
      %p52 = scmp.ne.s32.totalorder %s38, %s39
      %p53 = scmp.eq.s32.totalorder %s17, 35
      %p54 = por %p52, %p53
      %p56 = scmp.ne.s32.totalorder %s39, %s55
      %p57 = scmp.eq.s32.totalorder %s17, 0
      %p58 = por %p56, %p57
      %s59 = ssub.s32 %s19, %s26
      %p60 = scmp.eq.s32.totalorder %s59, 0
      %s62 = sadd.s32 %s61, 1
      %s63 = scalar_select %p60, %s61, %s62
      %p66 = pneg %p60
      %p67 = scmp.eq.s32.totalorder %s11, 35
      %p68 = por %p66, %p67
      %p69 = scmp.ne.s32.totalorder %s61, %s64
      %p70 = scmp.eq.s32.totalorder %s11, 0
      %p71 = por %p69, %p70
      %p72 = scmp.ne.s32.totalorder %s61, %s64
      %p73 = scmp.eq.s32.totalorder %s16, 35
      %p74 = por %p72, %p73
      %p75 = scmp.ne.s32.totalorder %s64, %s65
      %p76 = scmp.eq.s32.totalorder %s16, 0
      %p77 = por %p75, %p76
      %p78 = scmp.ne.s32.totalorder %s64, %s65
      %p79 = scmp.eq.s32.totalorder %s17, 35
      %p80 = por %p78, %p79
      %p82 = scmp.ne.s32.totalorder %s65, %s81
      %p83 = scmp.eq.s32.totalorder %s17, 0
      %p84 = por %p82, %p83
      %s86 = sadd.s32 %s85, 1
      %p89 = scmp.eq.s32.totalorder %s11, 35
      %p90 = scmp.ne.s32.totalorder %s85, %s87
      %p91 = scmp.eq.s32.totalorder %s11, 0
      %p92 = por %p90, %p91
      %p93 = scmp.ne.s32.totalorder %s85, %s87
      %p94 = scmp.eq.s32.totalorder %s16, 35
      %p95 = por %p93, %p94
      %p96 = scmp.ne.s32.totalorder %s87, %s88
      %p97 = scmp.eq.s32.totalorder %s16, 0
      %p98 = por %p96, %p97
      %p99 = scmp.ne.s32.totalorder %s87, %s88
      %p100 = scmp.eq.s32.totalorder %s17, 35
      %p101 = por %p99, %p100
      %p103 = scmp.ne.s32.totalorder %s88, %s102
      %p104 = scmp.eq.s32.totalorder %s17, 0
      %p105 = por %p103, %p104
      %s107 = sadd.s32 %s106, 1
      %p110 = scmp.eq.s32.totalorder %s11, 35
      %p111 = scmp.ne.s32.totalorder %s106, %s108
      %p112 = scmp.eq.s32.totalorder %s11, 0
      %p113 = por %p111, %p112
      %p114 = scmp.ne.s32.totalorder %s106, %s108
      %p115 = scmp.eq.s32.totalorder %s16, 35
      %p116 = por %p114, %p115
      %p117 = scmp.ne.s32.totalorder %s108, %s109
      %p118 = scmp.eq.s32.totalorder %s16, 0
      %p119 = por %p117, %p118
      %p120 = scmp.ne.s32.totalorder %s108, %s109
      %p121 = scmp.eq.s32.totalorder %s17, 35
      %p122 = por %p120, %p121
      %p124 = scmp.ne.s32.totalorder %s109, %s123
      %p125 = scmp.eq.s32.totalorder %s17, 0
      %p126 = por %p124, %p125
      %s128 = sadd.s32 %s127, 1
      %p131 = scmp.eq.s32.totalorder %s11, 35
      %p132 = scmp.ne.s32.totalorder %s127, %s129
      %p133 = scmp.eq.s32.totalorder %s11, 0
      %p134 = por %p132, %p133
      %p135 = scmp.ne.s32.totalorder %s127, %s129
      %p136 = scmp.eq.s32.totalorder %s16, 35
      %p137 = por %p135, %p136
      %p138 = scmp.ne.s32.totalorder %s129, %s130
      %p139 = scmp.eq.s32.totalorder %s16, 0
      %p140 = por %p138, %p139
      %p141 = scmp.ne.s32.totalorder %s129, %s130
      %p142 = scmp.eq.s32.totalorder %s17, 35
      %p143 = por %p141, %p142
      %p145 = scmp.ne.s32.totalorder %s130, %s144
      %p146 = scmp.eq.s32.totalorder %s17, 0
      %p147 = por %p145, %p146
      %s148 = ssub.s32 %s18, %s30
      %p149 = scmp.eq.s32.totalorder %s148, 0
      %s151 = sadd.s32 %s150, 1
      %s152 = scalar_select %p149, %s150, %s151
      %p155 = pneg %p149
      %p156 = scmp.eq.s32.totalorder %s11, 35
      %p157 = por %p155, %p156
      %p158 = scmp.ne.s32.totalorder %s150, %s153
      %p159 = scmp.eq.s32.totalorder %s11, 0
      %p160 = por %p158, %p159
      %p161 = scmp.ne.s32.totalorder %s150, %s153
      %p162 = scmp.eq.s32.totalorder %s16, 35
      %p163 = por %p161, %p162
      %p164 = scmp.ne.s32.totalorder %s153, %s154
      %p165 = scmp.eq.s32.totalorder %s16, 0
      %p166 = por %p164, %p165
      %p167 = scmp.ne.s32.totalorder %s153, %s154
      %p168 = scmp.eq.s32.totalorder %s17, 35
      %p169 = por %p167, %p168
      %p171 = scmp.ne.s32.totalorder %s154, %s170
      %p172 = scmp.eq.s32.totalorder %s17, 0
      %p173 = por %p171, %p172
      %p174 = scmp.le.s32.totalorder 1, %s11
      %p175 = scmp.lt.s32.totalorder %s11, 37
      %p176 = pnand %p174, %p175
      %p177 = pneg %p176
      // Predicated region
      $region9: #{graphtransgeo_gcn_forward.2} parent=5 // pred_check
        _
      $region10: #{graphtransgeo_gcn_forward.2} parent=5 // pred_check_branch
        %179 = sbr.rel (%p176) target = $region12
      $region11: #{graphtransgeo_gcn_forward.2} parent=5 // pred_region
        %s180 = ssub.s32 %s11, 1
        // Predicated region
        $region13: #{graphtransgeo_gcn_forward.2} parent=11 // pred_check
          %p181 = pneg %p98
        $region14: #{graphtransgeo_gcn_forward.2} parent=11 // pred_check_branch
          %183 = sbr.rel (%p181) target = $region16
        $region15: #{graphtransgeo_gcn_forward.2} parent=11 // pred_region
          _
        $region16: #{graphtransgeo_gcn_forward.2} parent=11 // pred_fallthru
          _
        // Predicated region
        $region17: #{graphtransgeo_gcn_forward.2} parent=11 // pred_check
          %p184 = pneg %p119
        $region18: #{graphtransgeo_gcn_forward.2} parent=11 // pred_check_branch
          %186 = sbr.rel (%p184) target = $region20
        $region19: #{graphtransgeo_gcn_forward.2} parent=11 // pred_region
          _
        $region20: #{graphtransgeo_gcn_forward.2} parent=11 // pred_fallthru
          _
        // Predicated region
        $region21: #{graphtransgeo_gcn_forward.2} parent=11 // pred_check
          %p187 = pneg %p140
        $region22: #{graphtransgeo_gcn_forward.2} parent=11 // pred_check_branch
          %189 = sbr.rel (%p187) target = $region24
        $region23: #{graphtransgeo_gcn_forward.2} parent=11 // pred_region
          _
        $region24: #{graphtransgeo_gcn_forward.2} parent=11 // pred_fallthru
          _
      $region12: #{graphtransgeo_gcn_forward.2} parent=5 // pred_fallthru
        _
      %p190 = scmp.lt.s32.totalorder %s11, 36
      // Predicated region
      $region25: #{graphtransgeo_gcn_forward.2} parent=5 // pred_check
        %p191 = pneg %p190
      $region26: #{graphtransgeo_gcn_forward.2} parent=5 // pred_check_branch
        %193 = sbr.rel (%p191) target = $region28
      $region27: #{graphtransgeo_gcn_forward.2} parent=5 // pred_region
        // Predicated region
        $region29: #{graphtransgeo_gcn_forward.2} parent=27 // pred_check
          %p194 = pneg %p45
        $region30: #{graphtransgeo_gcn_forward.2} parent=27 // pred_check_branch
          %196 = sbr.rel (%p194) target = $region32
        $region31: #{graphtransgeo_gcn_forward.2} parent=27 // pred_region
          %s197 = sand.u32 %s35, 1
          %s198 = sand.u32 %s35, 1
          %s199 = smul.addr %s198, 128
          %s200 = scalar_lea.vmem [#allocation3], %s199
          %s201 = smul.u32 16, %s18
          %s202 = smul.addr %s201, 6
          %s203 = sadd.s32 %s19, %s202
          %s204 = smul.addr %s203, 8
          %s205 = scalar_lea.vmem %s0, %s204
          // Predicated region
          $region33: #{graphtransgeo_gcn_forward.2} parent=31 // pred_check
            _
          $region34: #{graphtransgeo_gcn_forward.2} parent=31 // pred_check_branch
            %207 = sbr.rel (0) target = $region36
          $region35: #{graphtransgeo_gcn_forward.2} parent=31 // pred_region
            // Predicated region
            $region37: #{graphtransgeo_gcn_forward.2} parent=35 // pred_check
              _
            $region38: #{graphtransgeo_gcn_forward.2} parent=35 // pred_check_branch
              %209 = sbr.rel (0) target = $region40
            $region39: #{graphtransgeo_gcn_forward.2} parent=35 // pred_region
              // Predicated region
              $region52: #{graphtransgeo_gcn_forward.2} parent=39 // pred_check
                _
              $region53: #{graphtransgeo_gcn_forward.2} parent=39 // pred_check_branch
                %254 = sbr.rel (0) target = $region55
              $region54: #{graphtransgeo_gcn_forward.2} parent=39 // pred_region
                loop: start=0, step=1, limit=1
                $region56: #{graphtransgeo_gcn_forward.2} parent=54 // loop_pre_header
                  _
                $region57: #{graphtransgeo_gcn_forward.2} parent=54 // loop_header
                  %s256 = sphi 0, %s260
                  %p257 = scmp.ge.s32.totalorder %s256, 1
                  %s261 = sphi %s205, %s205
                  %s262 = sphi %s200, %s200
                $region58: #{graphtransgeo_gcn_forward.2} parent=54 // loop_header_branch
                  %259 = sbr.rel (%p257) target = $region62
                $region59: #{graphtransgeo_gcn_forward.2} parent=54 // loop_body
                  %v263 = vld [vmem:[%s261] sm:$0xff]
                  %264 = vst [vmem:[%s262] sm:$0xff] %v263
                  %v265 = vld [vmem:[%s261 + $0x30] sm:$0xff]
                  %266 = vst [vmem:[%s262 + $0x8] sm:$0xff] %v265
                  %v267 = vld [vmem:[%s261 + $0x60] sm:$0xff]
                  %268 = vst [vmem:[%s262 + $0x10] sm:$0xff] %v267
                  %v269 = vld [vmem:[%s261 + $0x90] sm:$0xff]
                  %270 = vst [vmem:[%s262 + $0x18] sm:$0xff] %v269
                  %v271 = vld [vmem:[%s261 + $0xc0] sm:$0xff]
                  %272 = vst [vmem:[%s262 + $0x20] sm:$0xff] %v271
                  %v273 = vld [vmem:[%s261 + $0xf0] sm:$0xff]
                  %274 = vst [vmem:[%s262 + $0x28] sm:$0xff] %v273
                  %v275 = vld [vmem:[%s261 + $0x120] sm:$0xff]
                  %276 = vst [vmem:[%s262 + $0x30] sm:$0xff] %v275
                  %v277 = vld [vmem:[%s261 + $0x150] sm:$0xff]
                  %278 = vst [vmem:[%s262 + $0x38] sm:$0xff] %v277
                  %v279 = vld [vmem:[%s261 + $0x180] sm:$0xff]
                  %280 = vst [vmem:[%s262 + $0x40] sm:$0xff] %v279
                  %v281 = vld [vmem:[%s261 + $0x1b0] sm:$0xff]
                  %282 = vst [vmem:[%s262 + $0x48] sm:$0xff] %v281
                  %v283 = vld [vmem:[%s261 + $0x1e0] sm:$0xff]
                  %284 = vst [vmem:[%s262 + $0x50] sm:$0xff] %v283
                  %v285 = vld [vmem:[%s261 + $0x210] sm:$0xff]
                  %286 = vst [vmem:[%s262 + $0x58] sm:$0xff] %v285
                  %v287 = vld [vmem:[%s261 + $0x240] sm:$0xff]
                  %288 = vst [vmem:[%s262 + $0x60] sm:$0xff] %v287
                  %v289 = vld [vmem:[%s261 + $0x270] sm:$0xff]
                  %290 = vst [vmem:[%s262 + $0x68] sm:$0xff] %v289
                  %v291 = vld [vmem:[%s261 + $0x2a0] sm:$0xff]
                  %292 = vst [vmem:[%s262 + $0x70] sm:$0xff] %v291
                  %v293 = vld [vmem:[%s261 + $0x2d0] sm:$0xff]
                  %294 = vst [vmem:[%s262 + $0x78] sm:$0xff] %v293
                $region60: #{graphtransgeo_gcn_forward.2} parent=54 // loop_footer
                  %s260 = sadd.s32 1, %s256
                $region61: #{graphtransgeo_gcn_forward.2} parent=54 // loop_footer_branch
                  %255 = sbr.rel target = $region57
                $region62: #{graphtransgeo_gcn_forward.2} parent=54 // loop_exit
                  _
              $region55: #{graphtransgeo_gcn_forward.2} parent=39 // pred_fallthru
                _
              // Predicated region
              $region63: #{graphtransgeo_gcn_forward.2} parent=39 // pred_check
                _
              $region64: #{graphtransgeo_gcn_forward.2} parent=39 // pred_check_branch
                %296 = sbr.rel target = $region66
              $region65: #{graphtransgeo_gcn_forward.2} parent=39 // pred_region
                _
              $region66: #{graphtransgeo_gcn_forward.2} parent=39 // pred_fallthru
                _
            $region40: #{graphtransgeo_gcn_forward.2} parent=35 // pred_fallthru
              _
            // Predicated region
            $region41: #{graphtransgeo_gcn_forward.2} parent=35 // pred_check
              _
            $region42: #{graphtransgeo_gcn_forward.2} parent=35 // pred_check_branch
              %211 = sbr.rel target = $region44
            $region43: #{graphtransgeo_gcn_forward.2} parent=35 // pred_region
              loop: start=0, step=1, limit=1
              $region45: #{graphtransgeo_gcn_forward.2} parent=43 // loop_pre_header
                _
              $region46: #{graphtransgeo_gcn_forward.2} parent=43 // loop_header
                %s214 = sphi 0, %s218
                %p215 = scmp.ge.s32.totalorder %s214, 1
                %s219 = sphi %s205, %s205
                %s220 = sphi %s200, %s200
              $region47: #{graphtransgeo_gcn_forward.2} parent=43 // loop_header_branch
                %217 = sbr.rel (%p215) target = $region51
              $region48: #{graphtransgeo_gcn_forward.2} parent=43 // loop_body
                %v221 = vld [vmem:[%s219] sm:$0xff]
                %222 = vst [vmem:[%s220] sm:$0xff] %v221
                %v223 = vld [vmem:[%s219 + $0x30] sm:$0xff]
                %224 = vst [vmem:[%s220 + $0x8] sm:$0xff] %v223
                %v225 = vld [vmem:[%s219 + $0x60] sm:$0xff]
                %226 = vst [vmem:[%s220 + $0x10] sm:$0xff] %v225
                %v227 = vld [vmem:[%s219 + $0x90] sm:$0xff]
                %228 = vst [vmem:[%s220 + $0x18] sm:$0xff] %v227
                %v229 = vld [vmem:[%s219 + $0xc0] sm:$0xff]
                %230 = vst [vmem:[%s220 + $0x20] sm:$0xff] %v229
                %v231 = vld [vmem:[%s219 + $0xf0] sm:$0xff]
                %232 = vst [vmem:[%s220 + $0x28] sm:$0xff] %v231
                %v233 = vld [vmem:[%s219 + $0x120] sm:$0xff]
                %234 = vst [vmem:[%s220 + $0x30] sm:$0xff] %v233
                %v235 = vld [vmem:[%s219 + $0x150] sm:$0xff]
                %236 = vst [vmem:[%s220 + $0x38] sm:$0xff] %v235
                %v237 = vld [vmem:[%s219 + $0x180] sm:$0xff]
                %238 = vst [vmem:[%s220 + $0x40] sm:$0xff] %v237
                %v239 = vld [vmem:[%s219 + $0x1b0] sm:$0xff]
                %240 = vst [vmem:[%s220 + $0x48] sm:$0xff] %v239
                %v241 = vld [vmem:[%s219 + $0x1e0] sm:$0xff]
                %242 = vst [vmem:[%s220 + $0x50] sm:$0xff] %v241
                %v243 = vld [vmem:[%s219 + $0x210] sm:$0xff]
                %244 = vst [vmem:[%s220 + $0x58] sm:$0xff] %v243
                %v245 = vld [vmem:[%s219 + $0x240] sm:$0xff]
                %246 = vst [vmem:[%s220 + $0x60] sm:$0xff] %v245
                %v247 = vld [vmem:[%s219 + $0x270] sm:$0xff]
                %248 = vst [vmem:[%s220 + $0x68] sm:$0xff] %v247
                %v249 = vld [vmem:[%s219 + $0x2a0] sm:$0xff]
                %250 = vst [vmem:[%s220 + $0x70] sm:$0xff] %v249
                %v251 = vld [vmem:[%s219 + $0x2d0] sm:$0xff]
                %252 = vst [vmem:[%s220 + $0x78] sm:$0xff] %v251
              $region49: #{graphtransgeo_gcn_forward.2} parent=43 // loop_footer
                %s218 = sadd.s32 1, %s214
              $region50: #{graphtransgeo_gcn_forward.2} parent=43 // loop_footer_branch
                %213 = sbr.rel target = $region46
              $region51: #{graphtransgeo_gcn_forward.2} parent=43 // loop_exit
                _
            $region44: #{graphtransgeo_gcn_forward.2} parent=35 // pred_fallthru
              _
          $region36: #{graphtransgeo_gcn_forward.2} parent=31 // pred_fallthru
            _
          %297 = vnop
        $region32: #{graphtransgeo_gcn_forward.2} parent=27 // pred_fallthru
          _
        // Predicated region
        $region67: #{graphtransgeo_gcn_forward.2} parent=27 // pred_check
          %p298 = pneg %p71
        $region68: #{graphtransgeo_gcn_forward.2} parent=27 // pred_check_branch
          %300 = sbr.rel (%p298) target = $region70
        $region69: #{graphtransgeo_gcn_forward.2} parent=27 // pred_region
          %s301 = smul.u32 16, %s19
          %p302 = scmp.lt.s32.totalorder %s301, 95
          %s303 = scalar_select %p302, %s301, 95
          %s304 = smul.addr %s303, 8
          %s305 = scalar_lea.vmem %s1, %s304
          %s306 = smul.u32 16, %s19
        $region70: #{graphtransgeo_gcn_forward.2} parent=27 // pred_fallthru
          _
      $region28: #{graphtransgeo_gcn_forward.2} parent=5 // pred_fallthru
        _
      %p307 = scmp.le.s32.totalorder 1, %s11
      %p308 = scmp.lt.s32.totalorder %s11, 37
      %p309 = pnand %p307, %p308
      %p310 = pneg %p309
      // Predicated region
      $region71: #{graphtransgeo_gcn_forward.2} parent=5 // pred_check
        _
      $region72: #{graphtransgeo_gcn_forward.2} parent=5 // pred_check_branch
        %312 = sbr.rel (%p309) target = $region74
      $region73: #{graphtransgeo_gcn_forward.2} parent=5 // pred_region
        %s313 = ssub.s32 %s11, 1
        %s314 = sand.u32 %s38, 1
        %s315 = sand.u32 %s38, 1
        %s316 = smul.addr %s315, 128
        %s317 = scalar_lea.vmem [#allocation3], %s316
        // Predicated region
        $region75: #{graphtransgeo_gcn_forward.2} parent=73 // pred_check
          %p318 = pneg %p51
        $region76: #{graphtransgeo_gcn_forward.2} parent=73 // pred_check_branch
          %320 = sbr.rel (%p318) target = $region78
        $region77: #{graphtransgeo_gcn_forward.2} parent=73 // pred_region
          _
        $region78: #{graphtransgeo_gcn_forward.2} parent=73 // pred_fallthru
          _
        %s321 = sand.u32 %s38, 1
        %s322 = sand.u32 %s38, 1
        %s323 = smul.addr %s322, 128
        %s324 = scalar_lea.vmem [#allocation3], %s323
        %p325 = pneg %p51
        %p326 = pneg %p48
        %s327 = smul.u32 16, %s21
        %p328 = scmp.lt.s32.totalorder %s327, 95
        %s329 = scalar_select %p328, %s327, 95
        %s330 = smul.addr %s329, 8
        %s331 = scalar_lea.vmem %s1, %s330
        %p332 = pneg %p77
        %p333 = pneg %p74
        %p334 = pneg %p98
        %p335 = pneg %p95
        %p336 = pneg %p119
        %p337 = pneg %p116
        %p338 = pneg %p140
        %p339 = pneg %p137
        %p340 = pneg %p166
        %p341 = pneg %p163
        %s342 = smul.u32 16, %s20
        %p343 = scmp.lt.s32.totalorder %s342, 95
        %s344 = scalar_select %p343, %s342, 95
        %s345 = smul.addr %s344, 8
        %s346 = scalar_lea.vmem %s5, %s345
        %s347 = smul.u32 16, %s20
        %s348 = smul.u32 16, %s21
        %p349 = scmp.lt.s32.totalorder %s348, 95
        %s350 = scalar_select %p349, %s348, 95
        %s351 = smul.addr %s350, 8
        %s352 = scalar_lea.vmem %s1, %s351
        %s353 = smul.u32 16, %s21
        %s354 = smul.u32 16, %s20
        %p355 = scmp.lt.s32.totalorder %s354, 95
        %s356 = scalar_select %p355, %s354, 95
        %s357 = smul.addr %s356, 8
        %s358 = scalar_lea.vmem %s5, %s357
        %s359 = smul.u32 16, %s20
        %p360 = scmp.eq.s32.totalorder %s21, 0
        // Predicated region
        $region79: #{graphtransgeo_gcn_forward.2} parent=73 // pred_check
          %p361 = pneg %p360
        $region80: #{graphtransgeo_gcn_forward.2} parent=73 // pred_check_branch
          %363 = sbr.rel (%p361) target = $region82
        $region81: #{graphtransgeo_gcn_forward.2} parent=73 // pred_region
          %364 = vst [vmem:[#allocation2] sm:$0xff] 0.0
          %365 = vst [vmem:[#allocation2 + $0x8] sm:$0xff] 0.0
          %366 = vst [vmem:[#allocation2 + $0x10] sm:$0xff] 0.0
          %367 = vst [vmem:[#allocation2 + $0x18] sm:$0xff] 0.0
          %368 = vst [vmem:[#allocation2 + $0x20] sm:$0xff] 0.0
          %369 = vst [vmem:[#allocation2 + $0x28] sm:$0xff] 0.0
          %370 = vst [vmem:[#allocation2 + $0x30] sm:$0xff] 0.0
          %371 = vst [vmem:[#allocation2 + $0x38] sm:$0xff] 0.0
          %372 = vst [vmem:[#allocation2 + $0x40] sm:$0xff] 0.0
          %373 = vst [vmem:[#allocation2 + $0x48] sm:$0xff] 0.0
          %374 = vst [vmem:[#allocation2 + $0x50] sm:$0xff] 0.0
          %375 = vst [vmem:[#allocation2 + $0x58] sm:$0xff] 0.0
          %376 = vst [vmem:[#allocation2 + $0x60] sm:$0xff] 0.0
          %377 = vst [vmem:[#allocation2 + $0x68] sm:$0xff] 0.0
          %378 = vst [vmem:[#allocation2 + $0x70] sm:$0xff] 0.0
          %379 = vst [vmem:[#allocation2 + $0x78] sm:$0xff] 0.0
        $region82: #{graphtransgeo_gcn_forward.2} parent=73 // pred_fallthru
          _
        %v380 = vld [vmem:[%s352] sm:$0xff]
        %v381 = vld [vmem:[%s352 + $0x8] sm:$0xff]
        %v382 = vld [vmem:[%s352 + $0x10] sm:$0xff]
        %v383 = vld [vmem:[%s352 + $0x18] sm:$0xff]
        %v384 = vld [vmem:[%s352 + $0x20] sm:$0xff]
        %v385 = vld [vmem:[%s352 + $0x28] sm:$0xff]
        %v386 = vld [vmem:[%s352 + $0x30] sm:$0xff]
        %v387 = vld [vmem:[%s352 + $0x38] sm:$0xff]
        %v388 = vld [vmem:[%s352 + $0x40] sm:$0xff]
        %v389 = vld [vmem:[%s352 + $0x48] sm:$0xff]
        %v390 = vld [vmem:[%s352 + $0x50] sm:$0xff]
        %v391 = vld [vmem:[%s352 + $0x58] sm:$0xff]
        %v392 = vld [vmem:[%s352 + $0x60] sm:$0xff]
        %v393 = vld [vmem:[%s352 + $0x68] sm:$0xff]
        %v394 = vld [vmem:[%s352 + $0x70] sm:$0xff]
        %v395 = vld [vmem:[%s352 + $0x78] sm:$0xff]
        %v396 = vld [vmem:[#allocation2] sm:$0xff]
        %v397 = vld [vmem:[#allocation2 + $0x8] sm:$0xff]
        %v398 = vld [vmem:[#allocation2 + $0x10] sm:$0xff]
        %v399 = vld [vmem:[#allocation2 + $0x18] sm:$0xff]
        %v400 = vld [vmem:[#allocation2 + $0x20] sm:$0xff]
        %v401 = vld [vmem:[#allocation2 + $0x28] sm:$0xff]
        %v402 = vld [vmem:[#allocation2 + $0x30] sm:$0xff]
        %v403 = vld [vmem:[#allocation2 + $0x38] sm:$0xff]
        %v404 = vld [vmem:[#allocation2 + $0x40] sm:$0xff]
        %v405 = vld [vmem:[#allocation2 + $0x48] sm:$0xff]
        %v406 = vld [vmem:[#allocation2 + $0x50] sm:$0xff]
        %v407 = vld [vmem:[#allocation2 + $0x58] sm:$0xff]
        %v408 = vld [vmem:[#allocation2 + $0x60] sm:$0xff]
        %v409 = vld [vmem:[#allocation2 + $0x68] sm:$0xff]
        %v410 = vld [vmem:[#allocation2 + $0x70] sm:$0xff]
        %v411 = vld [vmem:[#allocation2 + $0x78] sm:$0xff]
        %v412 = vld [vmem:[%s317] sm:$0xff]
        %v413 = vld [vmem:[%s317 + $0x8] sm:$0xff]
        %v414 = vld [vmem:[%s317 + $0x10] sm:$0xff]
        %v415 = vld [vmem:[%s317 + $0x18] sm:$0xff]
        %v416 = vld [vmem:[%s317 + $0x20] sm:$0xff]
        %v417 = vld [vmem:[%s317 + $0x28] sm:$0xff]
        %v418 = vld [vmem:[%s317 + $0x30] sm:$0xff]
        %v419 = vld [vmem:[%s317 + $0x38] sm:$0xff]
        %v420 = vld [vmem:[%s317 + $0x40] sm:$0xff]
        %v421 = vld [vmem:[%s317 + $0x48] sm:$0xff]
        %v422 = vld [vmem:[%s317 + $0x50] sm:$0xff]
        %v423 = vld [vmem:[%s317 + $0x58] sm:$0xff]
        %v424 = vld [vmem:[%s317 + $0x60] sm:$0xff]
        %v425 = vld [vmem:[%s317 + $0x68] sm:$0xff]
        %v426 = vld [vmem:[%s317 + $0x70] sm:$0xff]
        %v427 = vld [vmem:[%s317 + $0x78] sm:$0xff]
        %428 = vmatprep.subr.mxu0 0.0
        %429 = vmatpush1.msra.mxu0 %v380
        %430 = vmatprep.subr.mxu0 0.0
        %431 = vmatpush1.msra.mxu0 %v381
        %432 = vmatprep.subr.mxu0 0.0
        %433 = vmatpush1.msra.mxu0 %v382
        %434 = vmatprep.subr.mxu0 0.0
        %435 = vmatpush1.msra.mxu0 %v383
        %436 = vmatprep.subr.mxu0 0.0
        %437 = vmatpush1.msra.mxu0 %v384
        %438 = vmatprep.subr.mxu0 0.0
        %439 = vmatpush1.msra.mxu0 %v385
        %440 = vmatprep.subr.mxu0 0.0
        %441 = vmatpush1.msra.mxu0 %v386
        %442 = vmatprep.subr.mxu0 0.0
        %443 = vmatpush1.msra.mxu0 %v387
        %444 = vmatprep.subr.mxu0 0.0
        %445 = vmatpush1.msra.mxu0 %v388
        %446 = vmatprep.subr.mxu0 0.0
        %447 = vmatpush1.msra.mxu0 %v389
        %448 = vmatprep.subr.mxu0 0.0
        %449 = vmatpush1.msra.mxu0 %v390
        %450 = vmatprep.subr.mxu0 0.0
        %451 = vmatpush1.msra.mxu0 %v391
        %452 = vmatprep.subr.mxu0 0.0
        %453 = vmatpush1.msra.mxu0 %v392
        %454 = vmatprep.subr.mxu0 0.0
        %455 = vmatpush1.msra.mxu0 %v393
        %456 = vmatprep.subr.mxu0 0.0
        %457 = vmatpush1.msra.mxu0 %v394
        %458 = vmatprep.subr.mxu0 0.0
        %459 = vmatpush1.msra.mxu0 %v395
        %460 = vmatprep.subr.mxu0 0.0
        %461 = vmatpush1.msra.mxu0 0.0
        %462 = vmatprep.subr.mxu0 0.0
        %463 = vmatpush1.msra.mxu0 0.0
        %464 = vmatprep.subr.mxu0 0.0
        %465 = vmatpush1.msra.mxu0 0.0
        %466 = vmatprep.subr.mxu0 0.0
        %467 = vmatpush1.msra.mxu0 0.0
        %468 = vmatprep.subr.mxu0 0.0
        %469 = vmatpush1.msra.mxu0 0.0
        %470 = vmatprep.subr.mxu0 0.0
        %471 = vmatpush1.msra.mxu0 0.0
        %472 = vmatprep.subr.mxu0 0.0
        %473 = vmatpush1.msra.mxu0 0.0
        %474 = vmatprep.subr.mxu0 0.0
        %475 = vmatpush1.msra.mxu0 0.0
        %476 = vmatprep.subr.mxu0 0.0
        %477 = vmatpush1.msra.mxu0 0.0
        %478 = vmatprep.subr.mxu0 0.0
        %479 = vmatpush1.msra.mxu0 0.0
        %480 = vmatprep.subr.mxu0 0.0
        %481 = vmatpush1.msra.mxu0 0.0
        %482 = vmatprep.subr.mxu0 0.0
        %483 = vmatpush1.msra.mxu0 0.0
        %484 = vmatprep.subr.mxu0 0.0
        %485 = vmatpush1.msra.mxu0 0.0
        %486 = vmatprep.subr.mxu0 0.0
        %487 = vmatpush1.msra.mxu0 0.0
        %488 = vmatprep.subr.mxu0 0.0
        %489 = vmatpush1.msra.mxu0 0.0
        %490 = vmatprep.subr.mxu0 0.0
        %491 = vmatpush1.msra.mxu0 0.0
        %492 = vmatprep.mubr.f32.mxu0 0.0
        %493 = vmatmul.mubr.f32.gmra.mrb[0].mxu0 %v412
        %v494 = vpop.f32.mrb[0].mxu0
        %v495 = vadd.f32 0.0, %v494
        %v496 = vpop.f32.mrb[0].mxu0
        %497 = vmatprep.mubr.f32.mxu0 0.0
        %498 = vmatmul.mubr.f32.gmra.mrb[0].mxu0 %v413
        %v499 = vpop.f32.mrb[0].mxu0
        %v500 = vadd.f32 0.0, %v499
        %v501 = vpop.f32.mrb[0].mxu0
        %502 = vmatprep.mubr.f32.mxu0 0.0
        %503 = vmatmul.mubr.f32.gmra.mrb[0].mxu0 %v414
        %v504 = vpop.f32.mrb[0].mxu0
        %v505 = vadd.f32 0.0, %v504
        %v506 = vpop.f32.mrb[0].mxu0
        %507 = vmatprep.mubr.f32.mxu0 0.0
        %508 = vmatmul.mubr.f32.gmra.mrb[0].mxu0 %v415
        %v509 = vpop.f32.mrb[0].mxu0
        %v510 = vadd.f32 0.0, %v509
        %v511 = vpop.f32.mrb[0].mxu0
        %512 = vmatprep.mubr.f32.mxu0 0.0
        %513 = vmatmul.mubr.f32.gmra.mrb[0].mxu0 %v416
        %v514 = vpop.f32.mrb[0].mxu0
        %v515 = vadd.f32 0.0, %v514
        %v516 = vpop.f32.mrb[0].mxu0
        %517 = vmatprep.mubr.f32.mxu0 0.0
        %518 = vmatmul.mubr.f32.gmra.mrb[0].mxu0 %v417
        %v519 = vpop.f32.mrb[0].mxu0
        %v520 = vadd.f32 0.0, %v519
        %v521 = vpop.f32.mrb[0].mxu0
        %522 = vmatprep.mubr.f32.mxu0 0.0
        %523 = vmatmul.mubr.f32.gmra.mrb[0].mxu0 %v418
        %v524 = vpop.f32.mrb[0].mxu0
        %v525 = vadd.f32 0.0, %v524
        %v526 = vpop.f32.mrb[0].mxu0
        %527 = vmatprep.mubr.f32.mxu0 0.0
        %528 = vmatmul.mubr.f32.gmra.mrb[0].mxu0 %v419
        %v529 = vpop.f32.mrb[0].mxu0
        %v530 = vadd.f32 0.0, %v529
        %v531 = vpop.f32.mrb[0].mxu0
        %532 = vmatprep.mubr.f32.mxu0 0.0
        %533 = vmatmul.mubr.f32.gmra.mrb[0].mxu0 %v420
        %v534 = vpop.f32.mrb[0].mxu0
        %v535 = vadd.f32 0.0, %v534
        %v536 = vpop.f32.mrb[0].mxu0
        %537 = vmatprep.mubr.f32.mxu0 0.0
        %538 = vmatmul.mubr.f32.gmra.mrb[0].mxu0 %v421
        %v539 = vpop.f32.mrb[0].mxu0
        %v540 = vadd.f32 0.0, %v539
        %v541 = vpop.f32.mrb[0].mxu0
        %542 = vmatprep.mubr.f32.mxu0 0.0
        %543 = vmatmul.mubr.f32.gmra.mrb[0].mxu0 %v422
        %v544 = vpop.f32.mrb[0].mxu0
        %v545 = vadd.f32 0.0, %v544
        %v546 = vpop.f32.mrb[0].mxu0
        %547 = vmatprep.mubr.f32.mxu0 0.0
        %548 = vmatmul.mubr.f32.gmra.mrb[0].mxu0 %v423
        %v549 = vpop.f32.mrb[0].mxu0
        %v550 = vadd.f32 0.0, %v549
        %v551 = vpop.f32.mrb[0].mxu0
        %552 = vmatprep.mubr.f32.mxu0 0.0
        %553 = vmatmul.mubr.f32.gmra.mrb[0].mxu0 %v424
        %v554 = vpop.f32.mrb[0].mxu0
        %v555 = vadd.f32 0.0, %v554
        %v556 = vpop.f32.mrb[0].mxu0
        %557 = vmatprep.mubr.f32.mxu0 0.0
        %558 = vmatmul.mubr.f32.gmra.mrb[0].mxu0 %v425
        %v559 = vpop.f32.mrb[0].mxu0
        %v560 = vadd.f32 0.0, %v559
        %v561 = vpop.f32.mrb[0].mxu0
        %562 = vmatprep.mubr.f32.mxu0 0.0
        %563 = vmatmul.mubr.f32.gmra.mrb[0].mxu0 %v426
        %v564 = vpop.f32.mrb[0].mxu0
        %v565 = vadd.f32 0.0, %v564
        %v566 = vpop.f32.mrb[0].mxu0
        %567 = vmatprep.mubr.f32.mxu0 0.0
        %568 = vmatmul.mubr.f32.gmra.mrb[0].mxu0 %v427
        %v569 = vpop.f32.mrb[0].mxu0
        %v570 = vadd.f32 0.0, %v569
        %v571 = vpop.f32.mrb[0].mxu0
        %572 = vdwg.mxu0
        %v573 = vadd.f32 %v396, %v495
        %v574 = vadd.f32 %v397, %v500
        %v575 = vadd.f32 %v398, %v505
        %v576 = vadd.f32 %v399, %v510
        %v577 = vadd.f32 %v400, %v515
        %v578 = vadd.f32 %v401, %v520
        %v579 = vadd.f32 %v402, %v525
        %v580 = vadd.f32 %v403, %v530
        %v581 = vadd.f32 %v404, %v535
        %v582 = vadd.f32 %v405, %v540
        %v583 = vadd.f32 %v406, %v545
        %v584 = vadd.f32 %v407, %v550
        %v585 = vadd.f32 %v408, %v555
        %v586 = vadd.f32 %v409, %v560
        %v587 = vadd.f32 %v410, %v565
        %v588 = vadd.f32 %v411, %v570
        %589 = vst [vmem:[#allocation2] sm:$0xff] %v573
        %590 = vst [vmem:[#allocation2 + $0x8] sm:$0xff] %v574
        %591 = vst [vmem:[#allocation2 + $0x10] sm:$0xff] %v575
        %592 = vst [vmem:[#allocation2 + $0x18] sm:$0xff] %v576
        %593 = vst [vmem:[#allocation2 + $0x20] sm:$0xff] %v577
        %594 = vst [vmem:[#allocation2 + $0x28] sm:$0xff] %v578
        %595 = vst [vmem:[#allocation2 + $0x30] sm:$0xff] %v579
        %596 = vst [vmem:[#allocation2 + $0x38] sm:$0xff] %v580
        %597 = vst [vmem:[#allocation2 + $0x40] sm:$0xff] %v581
        %598 = vst [vmem:[#allocation2 + $0x48] sm:$0xff] %v582
        %599 = vst [vmem:[#allocation2 + $0x50] sm:$0xff] %v583
        %600 = vst [vmem:[#allocation2 + $0x58] sm:$0xff] %v584
        %601 = vst [vmem:[#allocation2 + $0x60] sm:$0xff] %v585
        %602 = vst [vmem:[#allocation2 + $0x68] sm:$0xff] %v586
        %603 = vst [vmem:[#allocation2 + $0x70] sm:$0xff] %v587
        %604 = vst [vmem:[#allocation2 + $0x78] sm:$0xff] %v588
        %p605 = scmp.eq.s32.totalorder %s21, 5
        // Predicated region
        $region83: #{graphtransgeo_gcn_forward.2} parent=73 // pred_check
          %p606 = pneg %p605
        $region84: #{graphtransgeo_gcn_forward.2} parent=73 // pred_check_branch
          %608 = sbr.rel (%p606) target = $region86
        $region85: #{graphtransgeo_gcn_forward.2} parent=73 // pred_region
          %v609 = vld [vmem:[#allocation2] sm:$0xff]
          %v610 = vld [vmem:[#allocation2 + $0x8] sm:$0xff]
          %v611 = vld [vmem:[#allocation2 + $0x10] sm:$0xff]
          %v612 = vld [vmem:[#allocation2 + $0x18] sm:$0xff]
          %v613 = vld [vmem:[#allocation2 + $0x20] sm:$0xff]
          %v614 = vld [vmem:[#allocation2 + $0x28] sm:$0xff]
          %v615 = vld [vmem:[#allocation2 + $0x30] sm:$0xff]
          %v616 = vld [vmem:[#allocation2 + $0x38] sm:$0xff]
          %v617 = vld [vmem:[#allocation2 + $0x40] sm:$0xff]
          %v618 = vld [vmem:[#allocation2 + $0x48] sm:$0xff]
          %v619 = vld [vmem:[#allocation2 + $0x50] sm:$0xff]
          %v620 = vld [vmem:[#allocation2 + $0x58] sm:$0xff]
          %v621 = vld [vmem:[#allocation2 + $0x60] sm:$0xff]
          %v622 = vld [vmem:[#allocation2 + $0x68] sm:$0xff]
          %v623 = vld [vmem:[#allocation2 + $0x70] sm:$0xff]
          %v624 = vld [vmem:[#allocation2 + $0x78] sm:$0xff]
          %v625 = vld [vmem:[%s2] sm:$0x1]
          %v627 = vlaneseq
          %v628 = vshrl.u32 %v627, 7
          %v629 = vsub.s32 0, %v628
          %v630 = vrot.slane %v625, %v629
          %v632 = vadd.f32 %v609, %v630
          %v633 = vadd.f32 %v610, %v630
          %v634 = vadd.f32 %v611, %v630
          %v635 = vadd.f32 %v612, %v630
          %v636 = vadd.f32 %v613, %v630
          %v637 = vadd.f32 %v614, %v630
          %v638 = vadd.f32 %v615, %v630
          %v639 = vadd.f32 %v616, %v630
          %v640 = vadd.f32 %v617, %v630
          %v641 = vadd.f32 %v618, %v630
          %v642 = vadd.f32 %v619, %v630
          %v643 = vadd.f32 %v620, %v630
          %v644 = vadd.f32 %v621, %v630
          %v645 = vadd.f32 %v622, %v630
          %v646 = vadd.f32 %v623, %v630
          %v647 = vadd.f32 %v624, %v630
          %v648 = vmax.f32 %v632, 0.0
          %v649 = vmax.f32 %v633, 0.0
          %v650 = vmax.f32 %v634, 0.0
          %v651 = vmax.f32 %v635, 0.0
          %v652 = vmax.f32 %v636, 0.0
          %v653 = vmax.f32 %v637, 0.0
          %v654 = vmax.f32 %v638, 0.0
          %v655 = vmax.f32 %v639, 0.0
          %v656 = vmax.f32 %v640, 0.0
          %v657 = vmax.f32 %v641, 0.0
          %v658 = vmax.f32 %v642, 0.0
          %v659 = vmax.f32 %v643, 0.0
          %v660 = vmax.f32 %v644, 0.0
          %v661 = vmax.f32 %v645, 0.0
          %v662 = vmax.f32 %v646, 0.0
          %v663 = vmax.f32 %v647, 0.0
          %v664 = vld [vmem:[%s3] sm:$0x1]
          %v666 = vlaneseq
          %v667 = vshrl.u32 %v666, 7
          %v668 = vsub.s32 0, %v667
          %v669 = vrot.slane %v664, %v668
          %v671 = vmul.f32 %v648, %v669
          %v672 = vmul.f32 %v649, %v669
          %v673 = vmul.f32 %v650, %v669
          %v674 = vmul.f32 %v651, %v669
          %v675 = vmul.f32 %v652, %v669
          %v676 = vmul.f32 %v653, %v669
          %v677 = vmul.f32 %v654, %v669
          %v678 = vmul.f32 %v655, %v669
          %v679 = vmul.f32 %v656, %v669
          %v680 = vmul.f32 %v657, %v669
          %v681 = vmul.f32 %v658, %v669
          %v682 = vmul.f32 %v659, %v669
          %v683 = vmul.f32 %v660, %v669
          %v684 = vmul.f32 %v661, %v669
          %v685 = vmul.f32 %v662, %v669
          %v686 = vmul.f32 %v663, %v669
          %v687 = vld [vmem:[%s4] sm:$0x1]
          %v689 = vlaneseq
          %v690 = vshrl.u32 %v689, 7
          %v691 = vsub.s32 0, %v690
          %v692 = vrot.slane %v687, %v691
          %v694 = vadd.f32 %v671, %v692
          %v695 = vadd.f32 %v672, %v692
          %v696 = vadd.f32 %v673, %v692
          %v697 = vadd.f32 %v674, %v692
          %v698 = vadd.f32 %v675, %v692
          %v699 = vadd.f32 %v676, %v692
          %v700 = vadd.f32 %v677, %v692
          %v701 = vadd.f32 %v678, %v692
          %v702 = vadd.f32 %v679, %v692
          %v703 = vadd.f32 %v680, %v692
          %v704 = vadd.f32 %v681, %v692
          %v705 = vadd.f32 %v682, %v692
          %v706 = vadd.f32 %v683, %v692
          %v707 = vadd.f32 %v684, %v692
          %v708 = vadd.f32 %v685, %v692
          %v709 = vadd.f32 %v686, %v692
          %710 = vst [vmem:[%s358] sm:$0xff] %v694
          %711 = vst [vmem:[%s358 + $0x8] sm:$0xff] %v695
          %712 = vst [vmem:[%s358 + $0x10] sm:$0xff] %v696
          %713 = vst [vmem:[%s358 + $0x18] sm:$0xff] %v697
          %714 = vst [vmem:[%s358 + $0x20] sm:$0xff] %v698
          %715 = vst [vmem:[%s358 + $0x28] sm:$0xff] %v699
          %716 = vst [vmem:[%s358 + $0x30] sm:$0xff] %v700
          %717 = vst [vmem:[%s358 + $0x38] sm:$0xff] %v701
          %718 = vst [vmem:[%s358 + $0x40] sm:$0xff] %v702
          %719 = vst [vmem:[%s358 + $0x48] sm:$0xff] %v703
          %720 = vst [vmem:[%s358 + $0x50] sm:$0xff] %v704
          %721 = vst [vmem:[%s358 + $0x58] sm:$0xff] %v705
          %722 = vst [vmem:[%s358 + $0x60] sm:$0xff] %v706
          %723 = vst [vmem:[%s358 + $0x68] sm:$0xff] %v707
          %724 = vst [vmem:[%s358 + $0x70] sm:$0xff] %v708
          %725 = vst [vmem:[%s358 + $0x78] sm:$0xff] %v709
        $region86: #{graphtransgeo_gcn_forward.2} parent=73 // pred_fallthru
          _
        %s726 = smul.u32 16, %s20
        %p727 = scmp.lt.s32.totalorder %s726, 95
        %s728 = scalar_select %p727, %s726, 95
        %s729 = smul.addr %s728, 8
        %s730 = scalar_lea.vmem %s5, %s729
        // Predicated region
        $region87: #{graphtransgeo_gcn_forward.2} parent=73 // pred_check
          %p731 = pneg %p163
        $region88: #{graphtransgeo_gcn_forward.2} parent=73 // pred_check_branch
          %733 = sbr.rel (%p731) target = $region90
        $region89: #{graphtransgeo_gcn_forward.2} parent=73 // pred_region
          %s734 = smul.u32 16, %s20
        $region90: #{graphtransgeo_gcn_forward.2} parent=73 // pred_fallthru
          _
      $region74: #{graphtransgeo_gcn_forward.2} parent=5 // pred_fallthru
        _
      %p735 = scmp.le.s32.totalorder 2, %s11
      // Predicated region
      $region91: #{graphtransgeo_gcn_forward.2} parent=5 // pred_check
        %p736 = pneg %p735
      $region92: #{graphtransgeo_gcn_forward.2} parent=5 // pred_check_branch
        %738 = sbr.rel (%p736) target = $region94
      $region93: #{graphtransgeo_gcn_forward.2} parent=5 // pred_region
        %s739 = ssub.s32 %s11, 2
        // Predicated region
        $region95: #{graphtransgeo_gcn_forward.2} parent=93 // pred_check
          %p740 = pneg %p169
        $region96: #{graphtransgeo_gcn_forward.2} parent=93 // pred_check_branch
          %742 = sbr.rel (%p740) target = $region98
        $region97: #{graphtransgeo_gcn_forward.2} parent=93 // pred_region
          %s743 = smul.u32 16, %s22
          %p744 = scmp.lt.s32.totalorder %s743, 95
          %s745 = scalar_select %p744, %s743, 95
          %s746 = smul.addr %s745, 8
          %s747 = scalar_lea.vmem %s5, %s746
        $region98: #{graphtransgeo_gcn_forward.2} parent=93 // pred_fallthru
          _
      $region94: #{graphtransgeo_gcn_forward.2} parent=5 // pred_fallthru
        _
    $region6: #{graphtransgeo_gcn_forward.2} parent=1 // loop_footer
      %s15 = sadd.s32 1, %s11
    $region7: #{graphtransgeo_gcn_forward.2} parent=1 // loop_footer_branch
      %10 = sbr.rel target = $region3
    $region8: #{graphtransgeo_gcn_forward.2} parent=1 // loop_exit
      _

</llo_original>
